<compile_context>
chip_gen: v5e
topology: v5e:2x2
jax: 0.10.0
libtpu: 0.0.40
codegen_flags: <defaults>
</compile_context>

<pallas_src>
import functools

import jax
import jax.numpy as jnp
from jax import lax
from jax.experimental import pallas as pl
from jax.experimental.pallas import tpu as pltpu


EPS = 1e-5
_VMEM_LIMIT_BYTES = 32 * 1024 * 1024      # safe on v5e/v6e (128 MiB) and v7x (64 MiB)
_TILE_VMEM_BUDGET = 24 * 1024 * 1024      # headroom inside the limit for the x/out buffers
_MIN_GRID_STEPS = 8                       # enough steps to hide DMA prologue / feed 2 TCs


def _conv_relu_norm_kernel(x_ref, w_ref, b_ref, m_ref, g_ref, beta_ref, o_ref, *, mxu_bf16):
    # x_ref:    (C_in, T_TILE)   one batch element's channels x time tile (NCT layout)
    # w_ref:    (C_out, C_in)    conv1d weight (kernel_size=1)
    # b_ref:    (C_out, 1)       conv bias
    # m_ref:    (1, T_TILE)      mask for this (batch, time-tile)
    # g_ref:    (C_out, 1)       layernorm gamma
    # beta_ref: (C_out, 1)       layernorm beta
    # o_ref:    (C_out, T_TILE)  output tile
    w = w_ref[...]
    xv = x_ref[...]
    if mxu_bf16:
        # v5e: keep the MXU on its fast bf16 path; accumulation stays f32.
        w = w.astype(jnp.bfloat16)
        xv = xv.astype(jnp.bfloat16)

    # kernel_size=1 conv == matmul contracting the channel dim on the MXU (f32 accumulate).
    y = lax.dot_general(
        w, xv,
        dimension_numbers=(((1,), (0,)), ((), ())),
        preferred_element_type=jnp.float32,
    )                                                        # (C_out, T_TILE) f32
    y = y + b_ref[...].astype(jnp.float32)                   # bias before mask (matches PyTorch)
    y = y * m_ref[...].astype(jnp.float32)                   # mask, broadcast over channels
    y = jnp.maximum(y, 0.0)                                  # ReLU

    # LayerNorm over the channel (sublane) axis, per time position -- single-pass statistics.
    inv_c = 1.0 / y.shape[0]
    mean = jnp.sum(y, axis=0, keepdims=True) * inv_c          # (1, T_TILE)
    mean_sq = jnp.sum(y * y, axis=0, keepdims=True) * inv_c   # (1, T_TILE)
    var = jnp.maximum(mean_sq - mean * mean, 0.0)
    inv = lax.rsqrt(var + EPS)
    out = (y - mean) * inv * g_ref[...].astype(jnp.float32) + beta_ref[...].astype(jnp.float32)

    o_ref[...] = out.astype(o_ref.dtype)


def _choose_t_tile(T_pad, B, C_in, C_out, itemsize, *, target=1024):
    """Pick a lane-dense (multiple-of-128) time tile.

    T_pad must already be a multiple of 128.  The tile is bounded by (a) the requested
    target width, (b) a VMEM budget for the double-buffered x/out tiles, and (c) having
    at least ~_MIN_GRID_STEPS grid steps so the pipeline and both TensorCores get work.
    """
    n128 = T_pad // 128
    k = max(1, min(target // 128, n128))
    # Double-buffered x-in + out tiles (+ mask row, negligible) per 128 lanes of tile.
    per_128 = 2 * (C_in + C_out + 1) * 128 * itemsize
    k = max(1, min(k, _TILE_VMEM_BUDGET // max(per_128, 1)))
    # Shrink until there are enough total grid steps (or the tile is already minimal).
    while k > 1 and B * pl.cdiv(n128, k) < _MIN_GRID_STEPS:
        k -= 1
    return 128 * k


def conv_relu_norm_block(x, x_mask, weight, bias, gamma, beta, *, t_tile=None, mxu_bf16=False):
    """x: (B, C_in, T) NCT; x_mask: (B, 1, T). Returns (B, C_out, T) NCT (same dtype as x)."""
    B, C_in, T = x.shape
    C_out = weight.shape[0]
    assert weight.shape == (C_out, C_in, 1), "only kernel_size=1 supported"

    # Pad T up to a multiple of 128 so every time tile is lane-dense and bounded (no
    # full-length fallback block).  Pad mask columns are zero; LN is per column, so the
    # pad never contaminates real outputs, and we slice it off afterwards.
    T_pad = pl.cdiv(T, 128) * 128
    if T_pad != T:
        pad = T_pad - T
        x = jnp.pad(x, ((0, 0), (0, 0), (0, pad)))
        x_mask = jnp.pad(x_mask, ((0, 0), (0, 0), (0, pad)))

    itemsize = jnp.dtype(x.dtype).itemsize
    if t_tile is None:
        t_tile = _choose_t_tile(T_pad, B, C_in, C_out, itemsize)
    assert t_tile % 128 == 0, "t_tile must be a multiple of 128"

    w2d = weight[:, :, 0]                # (C_out, C_in)
    b2d = bias.reshape(C_out, 1)
    g2d = gamma.reshape(C_out, 1)
    beta2d = beta.reshape(C_out, 1)

    grid = (B, pl.cdiv(T_pad, t_tile))   # any tail tile is clipped on store; LN is per column

    kernel = functools.partial(_conv_relu_norm_kernel, mxu_bf16=mxu_bf16)

    out = pl.pallas_call(
        kernel,
        out_shape=jax.ShapeDtypeStruct((B, C_out, T_pad), x.dtype),
        grid_spec=pltpu.PrefetchScalarGridSpec(
            num_scalar_prefetch=0,
            grid=grid,
            in_specs=[
                pl.BlockSpec((None, C_in, t_tile), lambda b, tj: (b, 0, tj)),   # x
                pl.BlockSpec((C_out, C_in), lambda b, tj: (0, 0)),              # weight (grid-invariant)
                pl.BlockSpec((C_out, 1), lambda b, tj: (0, 0)),                 # bias
                pl.BlockSpec((None, 1, t_tile), lambda b, tj: (b, 0, tj)),      # mask (lane-dense)
                pl.BlockSpec((C_out, 1), lambda b, tj: (0, 0)),                 # gamma
                pl.BlockSpec((C_out, 1), lambda b, tj: (0, 0)),                 # beta
            ],
            out_specs=pl.BlockSpec((None, C_out, t_tile), lambda b, tj: (b, 0, tj)),
        ),
        compiler_params=pltpu.CompilerParams(
            dimension_semantics=("parallel", "parallel"),
            vmem_limit_bytes=_VMEM_LIMIT_BYTES,
        ),
    )(x, w2d, b2d, x_mask, g2d, beta2d)

    if T_pad != T:
        out = out[:, :, :T]
    return out


def _reference(x, x_mask, weight, bias, gamma, beta):
    # pure-JAX reference of the PyTorch forward (for sanity check)
    y = jnp.einsum("bct,oc->bot", x, weight[:, :, 0]) + bias[None, :, None]
    y = y * x_mask
    y = jnp.maximum(y, 0.0)
    mean = jnp.mean(y, axis=1, keepdims=True)
    var = jnp.mean((y - mean) ** 2, axis=1, keepdims=True)
    yn = (y - mean) / jnp.sqrt(var + EPS)
    return yn * gamma[None, :, None] + beta[None, :, None]


if __name__ == "__main__":
    root_key = jax.random.PRNGKey(0)

    def _run_case(B, C_in, C_out, T, t_tile=None, mxu_bf16=False, seed_offset=0,
                  atol=1e-5, rtol=1e-5):
        kx, km, kw, kb, kg, ke = jax.random.split(jax.random.fold_in(root_key, seed_offset), 6)
        x = jax.random.normal(kx, (B, C_in, T), dtype=jnp.float32)
        x_mask = (jax.random.uniform(km, (B, 1, T)) > 0.2).astype(jnp.float32)
        weight = jax.random.normal(kw, (C_out, C_in, 1), dtype=jnp.float32) * 0.1
        bias = jax.random.normal(kb, (C_out,), dtype=jnp.float32) * 0.1
        gamma = 1.0 + 0.1 * jax.random.normal(kg, (C_out,), dtype=jnp.float32)
        beta = 0.1 * jax.random.normal(ke, (C_out,), dtype=jnp.float32)

        out = conv_relu_norm_block(x, x_mask, weight, bias, gamma, beta,
                                   t_tile=t_tile, mxu_bf16=mxu_bf16)
        out = jax.block_until_ready(out)
        ref = _reference(x, x_mask, weight, bias, gamma, beta)
        assert out.shape == (B, C_out, T)
        assert jnp.allclose(out, ref, atol=atol, rtol=rtol), "mismatch vs reference"

    # Small shapes consistent with the module defaults (kernel_size=1); T=16 exercises the
    # wrapper-side padding to a multiple of 128.
    _run_case(B=2, C_in=4, C_out=32, T=16)
    # Lane-dense multi-tile path: T multiple of 128, two time tiles per batch element.
    _run_case(B=2, C_in=8, C_out=48, T=256, t_tile=128, seed_offset=1)
    # Optional v5e bf16-MXU path (f32 accumulate), looser tolerance for the operand cast.
    _run_case(B=2, C_in=16, C_out=64, T=384, mxu_bf16=True, seed_offset=2,
              atol=5e-2, rtol=5e-2)

    print("KERNEL_OK")
</pallas_src>

<mosaic_0001>
module attributes {stable_mosaic.version = 11 : i64} {
  func.func @_conv_relu_norm_kernel(%arg0: i32, %arg1: i32, %arg2: memref<1x4x128xf32, #tpu.memory_space<vmem>>, %arg3: memref<32x4xf32, #tpu.memory_space<vmem>>, %arg4: memref<32x1xf32, #tpu.memory_space<vmem>>, %arg5: memref<1x1x128xf32, #tpu.memory_space<vmem>>, %arg6: memref<32x1xf32, #tpu.memory_space<vmem>>, %arg7: memref<32x1xf32, #tpu.memory_space<vmem>>, %arg8: memref<1x32x128xf32, #tpu.memory_space<vmem>>) attributes {dimension_semantics = [#tpu.dimension_semantics<parallel>, #tpu.dimension_semantics<parallel>], iteration_bounds = array<i64: 2, 1>, scalar_prefetch = 0 : i64, scratch_operands = 0 : i64, tpu.core_type = #tpu.core_type<tc>, window_params = [{transform_indices = @transform_0, window_bounds = array<i64: 1, 4, 128>}, {pipeline_mode = #tpu.pipeline_mode<synchronous>, transform_indices = @transform_1, window_bounds = array<i64: 32, 4>}, {pipeline_mode = #tpu.pipeline_mode<synchronous>, transform_indices = @transform_2, window_bounds = array<i64: 32, 1>}, {transform_indices = @transform_3, window_bounds = array<i64: 1, 1, 128>}, {pipeline_mode = #tpu.pipeline_mode<synchronous>, transform_indices = @transform_4, window_bounds = array<i64: 32, 1>}, {pipeline_mode = #tpu.pipeline_mode<synchronous>, transform_indices = @transform_5, window_bounds = array<i64: 32, 1>}, {transform_indices = @transform_6, window_bounds = array<i64: 1, 32, 128>}]} {
    %c0 = arith.constant 0 : index
    %c0_0 = arith.constant 0 : index
    %0 = vector.load %arg3[%c0, %c0_0] : memref<32x4xf32, #tpu.memory_space<vmem>>, vector<32x4xf32>
    %c0_1 = arith.constant 0 : index
    %c0_2 = arith.constant 0 : index
    %c0_3 = arith.constant 0 : index
    %1 = vector.load %arg2[%c0_1, %c0_2, %c0_3] : memref<1x4x128xf32, #tpu.memory_space<vmem>>, vector<1x4x128xf32>
    %2 = vector.shape_cast %1 : vector<1x4x128xf32> to vector<4x128xf32>
    %cst = arith.constant dense<0.000000e+00> : vector<32x128xf32>
    %3 = tpu.matmul %0, %2, %cst {dimension_numbers = #tpu.dot_dimension_numbers<[1], [0], [0], [1], [0, 0, 1, 1], [], []>} : vector<32x4xf32>, vector<4x128xf32>, vector<32x128xf32> -> vector<32x128xf32>
    %c0_4 = arith.constant 0 : index
    %c0_5 = arith.constant 0 : index
    %4 = vector.load %arg4[%c0_4, %c0_5] : memref<32x1xf32, #tpu.memory_space<vmem>>, vector<32x1xf32>
    %5 = vector.broadcast %4 : vector<32x1xf32> to vector<32x128xf32>
    %6 = arith.addf %3, %5 : vector<32x128xf32>
    %c0_6 = arith.constant 0 : index
    %c0_7 = arith.constant 0 : index
    %c0_8 = arith.constant 0 : index
    %7 = vector.load %arg5[%c0_6, %c0_7, %c0_8] : memref<1x1x128xf32, #tpu.memory_space<vmem>>, vector<1x1x128xf32>
    %8 = vector.shape_cast %7 : vector<1x1x128xf32> to vector<1x128xf32>
    %9 = vector.broadcast %8 : vector<1x128xf32> to vector<32x128xf32>
    %10 = arith.mulf %6, %9 : vector<32x128xf32>
    %cst_9 = arith.constant 0.000000e+00 : f32
    %11 = vector.broadcast %cst_9 : f32 to vector<32x128xf32>
    %12 = arith.maximumf %10, %11 : vector<32x128xf32>
    %cst_10 = arith.constant dense<0.000000e+00> : vector<128xf32>
    %13 = vector.multi_reduction <add>, %12, %cst_10 [0] : vector<32x128xf32> to vector<128xf32>
    %14 = vector.shape_cast %13 : vector<128xf32> to vector<1x128xf32>
    %cst_11 = arith.constant 3.125000e-02 : f32
    %15 = vector.broadcast %cst_11 : f32 to vector<1x128xf32>
    %16 = arith.mulf %14, %15 : vector<1x128xf32>
    %17 = arith.mulf %12, %12 : vector<32x128xf32>
    %cst_12 = arith.constant dense<0.000000e+00> : vector<128xf32>
    %18 = vector.multi_reduction <add>, %17, %cst_12 [0] : vector<32x128xf32> to vector<128xf32>
    %19 = vector.shape_cast %18 : vector<128xf32> to vector<1x128xf32>
    %cst_13 = arith.constant 3.125000e-02 : f32
    %20 = vector.broadcast %cst_13 : f32 to vector<1x128xf32>
    %21 = arith.mulf %19, %20 : vector<1x128xf32>
    %22 = arith.mulf %16, %16 : vector<1x128xf32>
    %23 = arith.subf %21, %22 : vector<1x128xf32>
    %cst_14 = arith.constant 0.000000e+00 : f32
    %24 = vector.broadcast %cst_14 : f32 to vector<1x128xf32>
    %25 = arith.maximumf %23, %24 : vector<1x128xf32>
    %cst_15 = arith.constant 9.99999974E-6 : f32
    %26 = vector.broadcast %cst_15 : f32 to vector<1x128xf32>
    %27 = arith.addf %25, %26 : vector<1x128xf32>
    %28 = math.rsqrt %27 : vector<1x128xf32>
    %29 = vector.broadcast %16 : vector<1x128xf32> to vector<32x128xf32>
    %30 = arith.subf %12, %29 : vector<32x128xf32>
    %31 = vector.broadcast %28 : vector<1x128xf32> to vector<32x128xf32>
    %32 = arith.mulf %30, %31 : vector<32x128xf32>
    %c0_16 = arith.constant 0 : index
    %c0_17 = arith.constant 0 : index
    %33 = vector.load %arg6[%c0_16, %c0_17] : memref<32x1xf32, #tpu.memory_space<vmem>>, vector<32x1xf32>
    %34 = vector.broadcast %33 : vector<32x1xf32> to vector<32x128xf32>
    %35 = arith.mulf %32, %34 : vector<32x128xf32>
    %c0_18 = arith.constant 0 : index
    %c0_19 = arith.constant 0 : index
    %36 = vector.load %arg7[%c0_18, %c0_19] : memref<32x1xf32, #tpu.memory_space<vmem>>, vector<32x1xf32>
    %37 = vector.broadcast %36 : vector<32x1xf32> to vector<32x128xf32>
    %38 = arith.addf %35, %37 : vector<32x128xf32>
    %c0_20 = arith.constant 0 : index
    %c0_21 = arith.constant 0 : index
    %c0_22 = arith.constant 0 : index
    %39 = vector.load %arg8[%c0_20, %c0_21, %c0_22] : memref<1x32x128xf32, #tpu.memory_space<vmem>>, vector<1x32x128xf32>
    %40 = vector.shape_cast %39 : vector<1x32x128xf32> to vector<32x128xf32>
    %41 = vector.shape_cast %38 : vector<32x128xf32> to vector<1x32x128xf32>
    tpu.vector_store %arg8[%c0_20, %c0_21, %c0_22], %41 {strides = array<i32>} : memref<1x32x128xf32, #tpu.memory_space<vmem>>, vector<1x32x128xf32>,
    return
  }
  func.func @transform_0(%arg0: i32, %arg1: i32) -> (i32, i32, i32) {
    %c0_i32 = arith.constant 0 : i32
    %c0_i32_0 = arith.constant 0 : i32
    return %arg0, %c0_i32, %arg1 : i32, i32, i32
  }
  func.func @transform_1(%arg0: i32, %arg1: i32) -> (i32, i32) {
    %c0_i32 = arith.constant 0 : i32
    %c0_i32_0 = arith.constant 0 : i32
    %c0_i32_1 = arith.constant 0 : i32
    return %c0_i32, %c0_i32_0 : i32, i32
  }
  func.func @transform_2(%arg0: i32, %arg1: i32) -> (i32, i32) {
    %c0_i32 = arith.constant 0 : i32
    %c0_i32_0 = arith.constant 0 : i32
    %c0_i32_1 = arith.constant 0 : i32
    return %c0_i32, %c0_i32_0 : i32, i32
  }
  func.func @transform_3(%arg0: i32, %arg1: i32) -> (i32, i32, i32) {
    %c0_i32 = arith.constant 0 : i32
    %c0_i32_0 = arith.constant 0 : i32
    return %arg0, %c0_i32, %arg1 : i32, i32, i32
  }
  func.func @transform_4(%arg0: i32, %arg1: i32) -> (i32, i32) {
    %c0_i32 = arith.constant 0 : i32
    %c0_i32_0 = arith.constant 0 : i32
    %c0_i32_1 = arith.constant 0 : i32
    return %c0_i32, %c0_i32_0 : i32, i32
  }
  func.func @transform_5(%arg0: i32, %arg1: i32) -> (i32, i32) {
    %c0_i32 = arith.constant 0 : i32
    %c0_i32_0 = arith.constant 0 : i32
    %c0_i32_1 = arith.constant 0 : i32
    return %c0_i32, %c0_i32_0 : i32, i32
  }
  func.func @transform_6(%arg0: i32, %arg1: i32) -> (i32, i32, i32) {
    %c0_i32 = arith.constant 0 : i32
    %c0_i32_0 = arith.constant 0 : i32
    return %arg0, %c0_i32, %arg1 : i32, i32, i32
  }
}

</mosaic_0001>

<llo_original>
// kernel: tpu_custom_call.1
$region0: #{tpu_custom_call.1}
  #allocation0 [shape = 'u32[]', space=smem, size = 0x4, offset = 0x4, fixed_abs, tag = 'smem constant byte address 0x4 - core index']
  #allocation1 [shape = 'u32[72,128]{1,0:T(1,128)}', space=vmem, size = 0x9000, scoped, tag = 'internal scratch']
  %s0 = inlined_call_operand.vmem [shape: f32[2,4,128], index: 0, kind: input, shape index: {}]
  %s1 = inlined_call_operand.vmem [shape: f32[32,4], index: 1, kind: input, shape index: {}]
  %s2 = inlined_call_operand.vmem [shape: f32[32,1], index: 2, kind: input, shape index: {}]
  %s3 = inlined_call_operand.vmem [shape: f32[2,1,128], index: 3, kind: input, shape index: {}]
  %s4 = inlined_call_operand.vmem [shape: f32[32,1], index: 4, kind: input, shape index: {}]
  %s5 = inlined_call_operand.vmem [shape: f32[32,1], index: 5, kind: input, shape index: {}]
  %s6 = inlined_call_operand.hbm [shape: f32[2,32,128], index: 6, kind: output, shape index: {}]
  %s7 = sld [smem:[#allocation0]]
  $region57: #{tpu_custom_call.1} parent=0
    _
  %s9 = ssub.s32 1, %s7
  %s10 = scalar_select 0, %s9, %s7
  $region1: #{tpu_custom_call.1} parent=0
    #allocation2 [shape = 'u8[32768]{0}', space=vmem, size = 0x8000, scoped, tag = 'output window, operand 0']
    #allocation3 [shape = 's32[2]{0}', space=sflag, size = 0x8, scoped, tag = 'scoped memory for tpu_custom_call.1']
    %11 = vsyncpa [#allocation3], 0
    %s12 = scalar_lea.sflag [#allocation3], 1
    %13 = vsyncpa %s12, 0
    loop: start=0, step=1, limit=4
    $region2: #{tpu_custom_call.1} parent=1 // loop_pre_header
      _
    $region3: #{tpu_custom_call.1} parent=1 // loop_header
      %s15 = sphi 0, %s19
      %p16 = scmp.ge.s32.totalorder %s15, 4
      %s22 = sphi 0, %s34
      %s23 = sphi 0, %s30
      %s24 = sphi 0, %s22
      %s25 = sphi 0, %s23
      %s26 = sphi 0, %s24
      %s27 = sphi 0, %s25
      %s39 = sphi 0, %s41
      %s42 = sphi 0, %s39
      %s43 = sphi 0, %s42
      %s59 = sphi 0, %s43
      %s63 = sphi 0, %s63
      %s65 = sphi 0, %s63
      %s66 = sphi 0, %s65
      %s80 = sphi 0, %s66
      %s84 = sphi 0, %s84
      %s86 = sphi 0, %s84
      %s87 = sphi 0, %s86
      %s101 = sphi 0, %s87
      %s109 = sphi 0, %s111
      %s112 = sphi 0, %s109
      %s113 = sphi 0, %s112
      %s129 = sphi 0, %s113
      %s133 = sphi 0, %s133
      %s135 = sphi 0, %s133
      %s136 = sphi 0, %s135
      %s150 = sphi 0, %s136
      %s154 = sphi 0, %s154
      %s156 = sphi 0, %s154
      %s157 = sphi 0, %s156
      %s171 = sphi 0, %s157
      %s179 = sphi 0, %s181
      %s182 = sphi 0, %s179
      %s183 = sphi 0, %s182
      %s199 = sphi 0, %s183
    $region4: #{tpu_custom_call.1} parent=1 // loop_header_branch
      %18 = sbr.rel (%p16) target = $region8
    $region5: #{tpu_custom_call.1} parent=1 // loop_body
      %s20 = ssub.s32 %s15, 1
      %s21 = ssub.s32 %s15, 2
      %s28 = sadd.s32 1, %s23
      %p29 = scmp.ge.s32.totalorder %s28, 1
      %s30 = scalar_select %p29, 0, %s28
      %s31 = sadd.s32 1, %s22
      %s32 = scalar_select %p29, %s31, %s22
      %p33 = scmp.ge.s32.totalorder %s32, 2
      %s34 = scalar_select %p33, 0, %s32
      %s35 = ssub.s32 %s22, %s34
      %s36 = ssub.s32 %s23, %s30
      %s37 = sor.u32 %s35, %s36
      %p38 = scmp.eq.s32.totalorder %s37, 0
      %s40 = sadd.s32 %s39, 1
      %s41 = scalar_select %p38, %s39, %s40
      %p44 = pneg %p38
      %p45 = scmp.eq.s32.totalorder %s15, 1
      %p46 = por %p44, %p45
      %p47 = scmp.ne.s32.totalorder %s39, %s42
      %p48 = scmp.eq.s32.totalorder %s15, 0
      %p49 = por %p47, %p48
      %p50 = scmp.ne.s32.totalorder %s39, %s42
      %p51 = scmp.eq.s32.totalorder %s20, 1
      %p52 = por %p50, %p51
      %p53 = scmp.ne.s32.totalorder %s42, %s43
      %p54 = scmp.eq.s32.totalorder %s20, 0
      %p55 = por %p53, %p54
      %p56 = scmp.ne.s32.totalorder %s42, %s43
      %p57 = scmp.eq.s32.totalorder %s21, 1
      %p58 = por %p56, %p57
      %p60 = scmp.ne.s32.totalorder %s43, %s59
      %p61 = scmp.eq.s32.totalorder %s21, 0
      %p62 = por %p60, %p61
      %s64 = sadd.s32 %s63, 1
      %p67 = scmp.eq.s32.totalorder %s15, 1
      %p68 = scmp.ne.s32.totalorder %s63, %s65
      %p69 = scmp.eq.s32.totalorder %s15, 0
      %p70 = por %p68, %p69
      %p71 = scmp.ne.s32.totalorder %s63, %s65
      %p72 = scmp.eq.s32.totalorder %s20, 1
      %p73 = por %p71, %p72
      %p74 = scmp.ne.s32.totalorder %s65, %s66
      %p75 = scmp.eq.s32.totalorder %s20, 0
      %p76 = por %p74, %p75
      %p77 = scmp.ne.s32.totalorder %s65, %s66
      %p78 = scmp.eq.s32.totalorder %s21, 1
      %p79 = por %p77, %p78
      %p81 = scmp.ne.s32.totalorder %s66, %s80
      %p82 = scmp.eq.s32.totalorder %s21, 0
      %p83 = por %p81, %p82
      %s85 = sadd.s32 %s84, 1
      %p88 = scmp.eq.s32.totalorder %s15, 1
      %p89 = scmp.ne.s32.totalorder %s84, %s86
      %p90 = scmp.eq.s32.totalorder %s15, 0
      %p91 = por %p89, %p90
      %p92 = scmp.ne.s32.totalorder %s84, %s86
      %p93 = scmp.eq.s32.totalorder %s20, 1
      %p94 = por %p92, %p93
      %p95 = scmp.ne.s32.totalorder %s86, %s87
      %p96 = scmp.eq.s32.totalorder %s20, 0
      %p97 = por %p95, %p96
      %p98 = scmp.ne.s32.totalorder %s86, %s87
      %p99 = scmp.eq.s32.totalorder %s21, 1
      %p100 = por %p98, %p99
      %p102 = scmp.ne.s32.totalorder %s87, %s101
      %p103 = scmp.eq.s32.totalorder %s21, 0
      %p104 = por %p102, %p103
      %s105 = ssub.s32 %s22, %s34
      %s106 = ssub.s32 %s23, %s30
      %s107 = sor.u32 %s105, %s106
      %p108 = scmp.eq.s32.totalorder %s107, 0
      %s110 = sadd.s32 %s109, 1
      %s111 = scalar_select %p108, %s109, %s110
      %p114 = pneg %p108
      %p115 = scmp.eq.s32.totalorder %s15, 1
      %p116 = por %p114, %p115
      %p117 = scmp.ne.s32.totalorder %s109, %s112
      %p118 = scmp.eq.s32.totalorder %s15, 0
      %p119 = por %p117, %p118
      %p120 = scmp.ne.s32.totalorder %s109, %s112
      %p121 = scmp.eq.s32.totalorder %s20, 1
      %p122 = por %p120, %p121
      %p123 = scmp.ne.s32.totalorder %s112, %s113
      %p124 = scmp.eq.s32.totalorder %s20, 0
      %p125 = por %p123, %p124
      %p126 = scmp.ne.s32.totalorder %s112, %s113
      %p127 = scmp.eq.s32.totalorder %s21, 1
      %p128 = por %p126, %p127
      %p130 = scmp.ne.s32.totalorder %s113, %s129
      %p131 = scmp.eq.s32.totalorder %s21, 0
      %p132 = por %p130, %p131
      %s134 = sadd.s32 %s133, 1
      %p137 = scmp.eq.s32.totalorder %s15, 1
      %p138 = scmp.ne.s32.totalorder %s133, %s135
      %p139 = scmp.eq.s32.totalorder %s15, 0
      %p140 = por %p138, %p139
      %p141 = scmp.ne.s32.totalorder %s133, %s135
      %p142 = scmp.eq.s32.totalorder %s20, 1
      %p143 = por %p141, %p142
      %p144 = scmp.ne.s32.totalorder %s135, %s136
      %p145 = scmp.eq.s32.totalorder %s20, 0
      %p146 = por %p144, %p145
      %p147 = scmp.ne.s32.totalorder %s135, %s136
      %p148 = scmp.eq.s32.totalorder %s21, 1
      %p149 = por %p147, %p148
      %p151 = scmp.ne.s32.totalorder %s136, %s150
      %p152 = scmp.eq.s32.totalorder %s21, 0
      %p153 = por %p151, %p152
      %s155 = sadd.s32 %s154, 1
      %p158 = scmp.eq.s32.totalorder %s15, 1
      %p159 = scmp.ne.s32.totalorder %s154, %s156
      %p160 = scmp.eq.s32.totalorder %s15, 0
      %p161 = por %p159, %p160
      %p162 = scmp.ne.s32.totalorder %s154, %s156
      %p163 = scmp.eq.s32.totalorder %s20, 1
      %p164 = por %p162, %p163
      %p165 = scmp.ne.s32.totalorder %s156, %s157
      %p166 = scmp.eq.s32.totalorder %s20, 0
      %p167 = por %p165, %p166
      %p168 = scmp.ne.s32.totalorder %s156, %s157
      %p169 = scmp.eq.s32.totalorder %s21, 1
      %p170 = por %p168, %p169
      %p172 = scmp.ne.s32.totalorder %s157, %s171
      %p173 = scmp.eq.s32.totalorder %s21, 0
      %p174 = por %p172, %p173
      %s175 = ssub.s32 %s22, %s34
      %s176 = ssub.s32 %s23, %s30
      %s177 = sor.u32 %s175, %s176
      %p178 = scmp.eq.s32.totalorder %s177, 0
      %s180 = sadd.s32 %s179, 1
      %s181 = scalar_select %p178, %s179, %s180
      %p184 = pneg %p178
      %p185 = scmp.eq.s32.totalorder %s15, 1
      %p186 = por %p184, %p185
      %p187 = scmp.ne.s32.totalorder %s179, %s182
      %p188 = scmp.eq.s32.totalorder %s15, 0
      %p189 = por %p187, %p188
      %p190 = scmp.ne.s32.totalorder %s179, %s182
      %p191 = scmp.eq.s32.totalorder %s20, 1
      %p192 = por %p190, %p191
      %p193 = scmp.ne.s32.totalorder %s182, %s183
      %p194 = scmp.eq.s32.totalorder %s20, 0
      %p195 = por %p193, %p194
      %p196 = scmp.ne.s32.totalorder %s182, %s183
      %p197 = scmp.eq.s32.totalorder %s21, 1
      %p198 = por %p196, %p197
      %p200 = scmp.ne.s32.totalorder %s183, %s199
      %p201 = scmp.eq.s32.totalorder %s21, 0
      %p202 = por %p200, %p201
      %p203 = scmp.le.s32.totalorder 1, %s15
      %p204 = scmp.lt.s32.totalorder %s15, 3
      %p205 = pnand %p203, %p204
      %p206 = pneg %p205
      // Predicated region
      $region9: #{tpu_custom_call.1} parent=5 // pred_check
        _
      $region10: #{tpu_custom_call.1} parent=5 // pred_check_branch
        %208 = sbr.rel (%p205) target = $region12
      $region11: #{tpu_custom_call.1} parent=5 // pred_region
        %s209 = ssub.s32 %s15, 1
        // Predicated region
        $region13: #{tpu_custom_call.1} parent=11 // pred_check
          %p210 = pneg %p76
        $region14: #{tpu_custom_call.1} parent=11 // pred_check_branch
          %212 = sbr.rel (%p210) target = $region16
        $region15: #{tpu_custom_call.1} parent=11 // pred_region
          _
        $region16: #{tpu_custom_call.1} parent=11 // pred_fallthru
          _
        // Predicated region
        $region17: #{tpu_custom_call.1} parent=11 // pred_check
          %p213 = pneg %p97
        $region18: #{tpu_custom_call.1} parent=11 // pred_check_branch
          %215 = sbr.rel (%p213) target = $region20
        $region19: #{tpu_custom_call.1} parent=11 // pred_region
          _
        $region20: #{tpu_custom_call.1} parent=11 // pred_fallthru
          _
        // Predicated region
        $region21: #{tpu_custom_call.1} parent=11 // pred_check
          %p216 = pneg %p146
        $region22: #{tpu_custom_call.1} parent=11 // pred_check_branch
          %218 = sbr.rel (%p216) target = $region24
        $region23: #{tpu_custom_call.1} parent=11 // pred_region
          _
        $region24: #{tpu_custom_call.1} parent=11 // pred_fallthru
          _
        // Predicated region
        $region25: #{tpu_custom_call.1} parent=11 // pred_check
          %p219 = pneg %p167
        $region26: #{tpu_custom_call.1} parent=11 // pred_check_branch
          %221 = sbr.rel (%p219) target = $region28
        $region27: #{tpu_custom_call.1} parent=11 // pred_region
          _
        $region28: #{tpu_custom_call.1} parent=11 // pred_fallthru
          _
      $region12: #{tpu_custom_call.1} parent=5 // pred_fallthru
        _
      %p222 = scmp.lt.s32.totalorder %s15, 2
      // Predicated region
      $region29: #{tpu_custom_call.1} parent=5 // pred_check
        %p223 = pneg %p222
      $region30: #{tpu_custom_call.1} parent=5 // pred_check_branch
        %225 = sbr.rel (%p223) target = $region32
      $region31: #{tpu_custom_call.1} parent=5 // pred_region
        // Predicated region
        $region33: #{tpu_custom_call.1} parent=31 // pred_check
          %p226 = pneg %p49
        $region34: #{tpu_custom_call.1} parent=31 // pred_check_branch
          %228 = sbr.rel (%p226) target = $region36
        $region35: #{tpu_custom_call.1} parent=31 // pred_region
          %p229 = scmp.lt.s32.totalorder %s22, 1
          %s230 = scalar_select %p229, %s22, 1
          %p231 = scmp.lt.s32.totalorder %s23, 0
          %s232 = scalar_select %p231, %s23, 0
          %s233 = sadd.s32 %s232, %s230
          %s234 = smul.addr %s233, 4
          %s235 = scalar_lea.vmem %s0, %s234
        $region36: #{tpu_custom_call.1} parent=31 // pred_fallthru
          _
        // Predicated region
        $region37: #{tpu_custom_call.1} parent=31 // pred_check
          %p236 = pneg %p119
        $region38: #{tpu_custom_call.1} parent=31 // pred_check_branch
          %238 = sbr.rel (%p236) target = $region40
        $region39: #{tpu_custom_call.1} parent=31 // pred_region
          %p239 = scmp.lt.s32.totalorder %s22, 1
          %s240 = scalar_select %p239, %s22, 1
          %p241 = scmp.lt.s32.totalorder %s23, 0
          %s242 = scalar_select %p241, %s23, 0
          %s243 = sadd.s32 %s242, %s240
          %s244 = scalar_lea.vmem %s3, %s243
        $region40: #{tpu_custom_call.1} parent=31 // pred_fallthru
          _
      $region32: #{tpu_custom_call.1} parent=5 // pred_fallthru
        _
      %p245 = scmp.le.s32.totalorder 1, %s15
      %p246 = scmp.lt.s32.totalorder %s15, 3
      %p247 = pnand %p245, %p246
      %p248 = pneg %p247
      // Predicated region
      $region41: #{tpu_custom_call.1} parent=5 // pred_check
        _
      $region42: #{tpu_custom_call.1} parent=5 // pred_check_branch
        %250 = sbr.rel (%p247) target = $region44
      $region43: #{tpu_custom_call.1} parent=5 // pred_region
        %s251 = ssub.s32 %s15, 1
        %p252 = scmp.lt.s32.totalorder %s24, 1
        %s253 = scalar_select %p252, %s24, 1
        %p254 = scmp.lt.s32.totalorder %s25, 0
        %s255 = scalar_select %p254, %s25, 0
        %s256 = sadd.s32 %s255, %s253
        %s257 = smul.addr %s256, 4
        %s258 = scalar_lea.vmem %s0, %s257
        %p259 = pneg %p55
        %p260 = pneg %p52
        %p261 = pneg %p76
        %p262 = pneg %p73
        %p263 = pneg %p97
        %p264 = pneg %p94
        %p265 = scmp.lt.s32.totalorder %s24, 1
        %s266 = scalar_select %p265, %s24, 1
        %p267 = scmp.lt.s32.totalorder %s25, 0
        %s268 = scalar_select %p267, %s25, 0
        %s269 = sadd.s32 %s268, %s266
        %s270 = scalar_lea.vmem %s3, %s269
        %p271 = pneg %p125
        %p272 = pneg %p122
        %p273 = pneg %p146
        %p274 = pneg %p143
        %p275 = pneg %p167
        %p276 = pneg %p164
        %p277 = pneg %p195
        %p278 = pneg %p192
        %s279 = sand.u32 %s182, 1
        %s280 = scalar_lea.sflag [#allocation3], %s279
        %s281 = sand.u32 %s182, 1
        %s282 = smul.addr %s281, 32
        %s283 = scalar_lea.vmem [#allocation2], %s282
        %p284 = scmp.lt.s32.totalorder %s24, 1
        %s285 = scalar_select %p284, %s24, 1
        %p286 = scmp.lt.s32.totalorder %s25, 0
        %s287 = scalar_select %p286, %s25, 0
        %s288 = sadd.s32 %s287, %s285
        %s289 = smul.addr %s288, 4
        %s290 = scalar_lea.vmem %s0, %s289
        %p291 = scmp.lt.s32.totalorder %s24, 1
        %s292 = scalar_select %p291, %s24, 1
        %p293 = scmp.lt.s32.totalorder %s25, 0
        %s294 = scalar_select %p293, %s25, 0
        %s295 = sadd.s32 %s294, %s292
        %s296 = scalar_lea.vmem %s3, %s295
        %v297 = vld [vmem:[%s1] sm:$0xff]
        %v298 = vld [vmem:[%s1 + $0x8] sm:$0xff]
        %v299 = vld [vmem:[%s1 + $0x10] sm:$0xff]
        %v300 = vld [vmem:[%s1 + $0x18] sm:$0xff]
        %v301 = vld [vmem:[%s290] sm:$0xf]
        %v302 = vld [vmem:[%s2] sm:$0xff]
        %v303 = vld [vmem:[%s2 + $0x8] sm:$0xff]
        %v304 = vld [vmem:[%s2 + $0x10] sm:$0xff]
        %v305 = vld [vmem:[%s2 + $0x18] sm:$0xff]
        %307 = vset.pattern.permute.xlu0 0
        %308 = vperm.xlu0 %307, %v302
        %v309 = vpop.permute.xlu0 %308
        %312 = vset.pattern.permute.xlu0 0
        %313 = vperm.xlu0 %312, %v303
        %v314 = vpop.permute.xlu0 %313
        %317 = vset.pattern.permute.xlu0 0
        %318 = vperm.xlu0 %317, %v304
        %v319 = vpop.permute.xlu0 %318
        %322 = vset.pattern.permute.xlu0 0
        %323 = vperm.xlu0 %322, %v305
        %v324 = vpop.permute.xlu0 %323
        %vm326 = vcmask 31744
        %v328 = vsel %vm326, %v297, 0
        %v331 = vsel %vm326, %v298, 0
        %v334 = vsel %vm326, %v299, 0
        %v337 = vsel %vm326, %v300, 0
        %vm339 = vcmask 1043456
        %v341 = vsel %vm339, %v301, 0
        %343 = vmatpush.msra.mxu0 0.0
        %344 = vmatpush.msra.mxu0 0.0
        %345 = vmatpush.msra.mxu0 0.0
        %346 = vmatpush.msra.mxu0 0.0
        %347 = vmatpush.msra.mxu0 0.0
        %348 = vmatpush.msra.mxu0 0.0
        %349 = vmatpush.msra.mxu0 0.0
        %350 = vmatpush.msra.mxu0 0.0
        %351 = vmatpush.msra.mxu0 0.0
        %352 = vmatpush.msra.mxu0 0.0
        %353 = vmatpush.msra.mxu0 0.0
        %354 = vmatpush.msra.mxu0 0.0
        %355 = vmatpush.msra.mxu0 0.0
        %356 = vmatpush.msra.mxu0 0.0
        %357 = vmatpush.msra.mxu0 0.0
        %358 = vmatpush.msra.mxu0 %v341
        %359 = vmatmul.f32.gmra.mxu0 %v328
        %v360 = vpop.f32.mrf.mxu0
        %v361 = vadd.f32 %v309, %v360
        %362 = vmatmul.f32.gmra.mxu0 %v331
        %v363 = vpop.f32.mrf.mxu0
        %v364 = vadd.f32 %v314, %v363
        %365 = vmatmul.f32.gmra.mxu0 %v334
        %v366 = vpop.f32.mrf.mxu0
        %v367 = vadd.f32 %v319, %v366
        %368 = vmatmul.f32.gmra.mxu0 %v337
        %v369 = vpop.f32.mrf.mxu0
        %v370 = vadd.f32 %v324, %v369
        %371 = vdwg.mxu0
        %v372 = vld [vmem:[%s296] sm:$0x1]
        %v374 = vperm.slane %v372, 0
        %v376 = vmul.f32 %v361, %v374
        %v377 = vmul.f32 %v364, %v374
        %v378 = vmul.f32 %v367, %v374
        %v379 = vmul.f32 %v370, %v374
        %v380 = vmax.f32 %v376, 0.0
        %v381 = vmax.f32 %v377, 0.0
        %v382 = vmax.f32 %v378, 0.0
        %v383 = vmax.f32 %v379, 0.0
        %v384 = vadd.f32 %v380, %v381
        %v385 = vadd.f32 %v384, %v382
        %v386 = vadd.f32 %v385, %v383
        %v387 = vrot.slane %v386, 4
        %v388 = vadd.f32 %v386, %v387
        %v389 = vrot.slane %v388, 2
        %v390 = vadd.f32 %v388, %v389
        %v391 = vrot.slane %v390, 1
        %v392 = vadd.f32 %v390, %v391
        %v393 = vmul.f32 %v392, 0.03125
        %v394 = vmul.f32 %v380, %v380
        %v395 = vmul.f32 %v381, %v381
        %v396 = vmul.f32 %v382, %v382
        %v397 = vmul.f32 %v383, %v383
        %v398 = vadd.f32 %v394, %v395
        %v399 = vadd.f32 %v398, %v396
        %v400 = vadd.f32 %v399, %v397
        %v401 = vrot.slane %v400, 4
        %v402 = vadd.f32 %v400, %v401
        %v403 = vrot.slane %v402, 2
        %v404 = vadd.f32 %v402, %v403
        %v405 = vrot.slane %v404, 1
        %v406 = vadd.f32 %v404, %v405
        %v407 = vmul.f32 %v406, 0.03125
        %v408 = vmul.f32 %v393, %v393
        %v409 = vsub.f32 %v407, %v408
        %v410 = vmax.f32 %v409, 0.0
        %v411 = vadd.f32 %v410, 1e-05
        %v412 = vrsqrt.pop %v411
        %v413 = vmul.f32 %v412, %v411
        %v414 = vmul.f32 %v413, %v412
        %v415 = vmul.f32 0.5, %v414
        %v416 = vsub.f32 1.5, %v415
        %v417 = vmul.f32 %v412, %v416
        %vm418 = vweird.f32 %v411
        %vm419 = vweird.f32 %v412
        %vm420 = vmor %vm418, %vm419
        %v421 = vsel %vm420, %v412, %v417
        %v422 = vsub.f32 %v380, %v393
        %v423 = vsub.f32 %v381, %v393
        %v424 = vsub.f32 %v382, %v393
        %v425 = vsub.f32 %v383, %v393
        %v426 = vmul.f32 %v422, %v421
        %v427 = vmul.f32 %v423, %v421
        %v428 = vmul.f32 %v424, %v421
        %v429 = vmul.f32 %v425, %v421
        %v430 = vld [vmem:[%s4] sm:$0xff]
        %v431 = vld [vmem:[%s4 + $0x8] sm:$0xff]
        %v432 = vld [vmem:[%s4 + $0x10] sm:$0xff]
        %v433 = vld [vmem:[%s4 + $0x18] sm:$0xff]
        %435 = vset.pattern.permute.xlu0 0
        %436 = vperm.xlu0 %435, %v430
        %v437 = vpop.permute.xlu0 %436
        %440 = vset.pattern.permute.xlu0 0
        %441 = vperm.xlu0 %440, %v431
        %v442 = vpop.permute.xlu0 %441
        %445 = vset.pattern.permute.xlu0 0
        %446 = vperm.xlu0 %445, %v432
        %v447 = vpop.permute.xlu0 %446
        %450 = vset.pattern.permute.xlu0 0
        %451 = vperm.xlu0 %450, %v433
        %v452 = vpop.permute.xlu0 %451
        %v454 = vmul.f32 %v426, %v437
        %v455 = vmul.f32 %v427, %v442
        %v456 = vmul.f32 %v428, %v447
        %v457 = vmul.f32 %v429, %v452
        %v458 = vld [vmem:[%s5] sm:$0xff]
        %v459 = vld [vmem:[%s5 + $0x8] sm:$0xff]
        %v460 = vld [vmem:[%s5 + $0x10] sm:$0xff]
        %v461 = vld [vmem:[%s5 + $0x18] sm:$0xff]
        %463 = vset.pattern.permute.xlu0 0
        %464 = vperm.xlu0 %463, %v458
        %v465 = vpop.permute.xlu0 %464
        %468 = vset.pattern.permute.xlu0 0
        %469 = vperm.xlu0 %468, %v459
        %v470 = vpop.permute.xlu0 %469
        %473 = vset.pattern.permute.xlu0 0
        %474 = vperm.xlu0 %473, %v460
        %v475 = vpop.permute.xlu0 %474
        %478 = vset.pattern.permute.xlu0 0
        %479 = vperm.xlu0 %478, %v461
        %v480 = vpop.permute.xlu0 %479
        %v482 = vadd.f32 %v454, %v465
        %v483 = vadd.f32 %v455, %v470
        %v484 = vadd.f32 %v456, %v475
        %v485 = vadd.f32 %v457, %v480
        %486 = vst [vmem:[%s283] sm:$0xff] %v482
        %487 = vst [vmem:[%s283 + $0x8] sm:$0xff] %v483
        %488 = vst [vmem:[%s283 + $0x10] sm:$0xff] %v484
        %489 = vst [vmem:[%s283 + $0x18] sm:$0xff] %v485
        %s490 = sand.u32 %s182, 1
        %s491 = scalar_lea.sflag [#allocation3], %s490
        %s492 = sand.u32 %s182, 1
        %s493 = smul.addr %s492, 32
        %s494 = scalar_lea.vmem [#allocation2], %s493
        // Predicated region
        $region45: #{tpu_custom_call.1} parent=43 // pred_check
          %p495 = pneg %p192
        $region46: #{tpu_custom_call.1} parent=43 // pred_check_branch
          %497 = sbr.rel (%p495) target = $region48
        $region47: #{tpu_custom_call.1} parent=43 // pred_region
          %499 = vsyncadd %s491, 0
          %s500 = smul.addr %s24, 4
          %s501 = sadd.s32 %s25, %s500
          %s502 = smul.addr %s501, 8
          %s503 = scalar_lea.hbm %s6, %s502
          %s504 = sshll.u32 %s494, 4
          %s505 = int_to_ptr.vmem [resolvable:$true] %s504
          %s506 = sshll.u32 %s503, 4
          %s507 = int_to_ptr.hbm [resolvable:$true] %s506
          %512 = dma.vmem_to_hbm [thread:$0]  %s505, 512, %s507, %s491, 128, 128, 8
        $region48: #{tpu_custom_call.1} parent=43 // pred_fallthru
          _
      $region44: #{tpu_custom_call.1} parent=5 // pred_fallthru
        _
      %p513 = scmp.le.s32.totalorder 2, %s15
      // Predicated region
      $region49: #{tpu_custom_call.1} parent=5 // pred_check
        %p514 = pneg %p513
      $region50: #{tpu_custom_call.1} parent=5 // pred_check_branch
        %516 = sbr.rel (%p514) target = $region52
      $region51: #{tpu_custom_call.1} parent=5 // pred_region
        %s517 = ssub.s32 %s15, 2
        // Predicated region
        $region53: #{tpu_custom_call.1} parent=51 // pred_check
          %p518 = pneg %p198
        $region54: #{tpu_custom_call.1} parent=51 // pred_check_branch
          %520 = sbr.rel (%p518) target = $region56
        $region55: #{tpu_custom_call.1} parent=51 // pred_region
          %s521 = sand.u32 %s183, 1
          %s522 = scalar_lea.sflag [#allocation3], %s521
          %s523 = sand.u32 %s183, 1
          %s524 = smul.addr %s523, 32
          %s525 = scalar_lea.vmem [#allocation2], %s524
          %527 = dma.done %s522, 512
        $region56: #{tpu_custom_call.1} parent=51 // pred_fallthru
          _
      $region52: #{tpu_custom_call.1} parent=5 // pred_fallthru
        _
    $region6: #{tpu_custom_call.1} parent=1 // loop_footer
      %s19 = sadd.s32 1, %s15
    $region7: #{tpu_custom_call.1} parent=1 // loop_footer_branch
      %14 = sbr.rel target = $region3
    $region8: #{tpu_custom_call.1} parent=1 // loop_exit
      _
    %528 = vsyncpa [#allocation3], 1
    %s529 = scalar_lea.sflag [#allocation3], 1
    %530 = vsyncpa %s529, 1

</llo_original>
